<compile_context>
chip_gen: v7x
topology: tpu7x:2x2x1
jax: 0.10.0
libtpu: 0.0.40
codegen_flags: <defaults>
</compile_context>

<pallas_src>
import jax
import jax.numpy as jnp
from jax.experimental import pallas as pl
from jax.experimental.pallas import tpu as pltpu

# ---- packed-parameter layout (rows of the (64, 32) parameter buffer) ----
_W1_LO, _W1_HI   = 0, 25     # w1  (25, 16)
_B1_R            = 25        # b1  ( 1, 16)
_W23_LO, _W23_HI = 26, 42    # w23 (16, 16)  == w2 @ w3   (fused, no ReLU in between)
_B23_R           = 42        # b23 ( 1, 16)  == b2 @ w3 + b3
_W4_LO, _W4_HI   = 43, 59    # w4  (16, 25)
_B4_R            = 59        # b4  ( 1, 25)
_PACK_ROWS, _PACK_COLS = 64, 32

_D_IN, _D_HID, _D_OUT = 25, 16, 25


def autoencoder_kernel(x_ref, p_ref, o_ref):
    x = x_ref[...]                                  # (TB, 25)

    # Static slices out of the single packed parameter window.
    w1  = p_ref[_W1_LO:_W1_HI,     0:_D_HID]        # (25, 16)
    b1  = p_ref[_B1_R:_B1_R + 1,   0:_D_HID]        # ( 1, 16)
    w23 = p_ref[_W23_LO:_W23_HI,   0:_D_HID]        # (16, 16)
    b23 = p_ref[_B23_R:_B23_R + 1, 0:_D_HID]        # ( 1, 16)
    w4  = p_ref[_W4_LO:_W4_HI,     0:_D_OUT]        # (16, 25)
    b4  = p_ref[_B4_R:_B4_R + 1,   0:_D_OUT]        # ( 1, 25)

    # encoder Linear(25->16) + ReLU
    h1 = jnp.dot(x, w1, preferred_element_type=jnp.float32) + b1
    h1 = jnp.maximum(h1, 0.0)
    # encoder Linear(16->9) and decoder Linear(9->16) fused (no nonlinearity between
    # them) into a single 16->16 linear, followed by the decoder's ReLU.
    h2 = jnp.dot(h1.astype(w23.dtype), w23, preferred_element_type=jnp.float32) + b23
    h2 = jnp.maximum(h2, 0.0)
    # decoder Linear(16->25)
    y = jnp.dot(h2.astype(w4.dtype), w4, preferred_element_type=jnp.float32) + b4

    o_ref[...] = y.astype(o_ref.dtype)


def fuse_params(params):
    """Fold Linear(16->9) -> Linear(9->16) into one 16->16 linear (exact algebra)."""
    return {
        "w1": params["w1"], "b1": params["b1"],
        "w23": params["w2"] @ params["w3"],
        "b23": params["b2"] @ params["w3"] + params["b3"],
        "w4": params["w4"], "b4": params["b4"],
    }


def pack_params(fused, dtype=jnp.float32):
    """Pack all fused weights/biases into one (64, 32) buffer -> one VMEM window."""
    def pad_cols(a):
        return jnp.pad(a, ((0, 0), (0, _PACK_COLS - a.shape[1])))
    packed = jnp.concatenate(
        [pad_cols(fused[k]) for k in ("w1", "b1", "w23", "b23", "w4", "b4")], axis=0)
    packed = jnp.pad(packed, ((0, _PACK_ROWS - packed.shape[0]), (0, 0)))
    return packed.astype(dtype)


def autoencoder_forward(x, fused_params, *, tb=512, compute_dtype=jnp.float32):
    """x: (B, 25) float32. fused_params: output of fuse_params(). Returns (B, 25) f32."""
    B, d_in = x.shape
    assert d_in == _D_IN

    packed = pack_params(fused_params, compute_dtype)

    # Batch tile: multiple of 8 sublanes, no larger than the batch, and small enough
    # that the grid has >= 2 steps (keeps both v7x TensorCores busy when possible).
    tb = max(8, (min(tb, B) // 8) * 8)
    tb = min(tb, max(8, (pl.cdiv(B, 2) // 8) * 8))
    padded_B = pl.cdiv(B, tb) * tb

    x_in = x.astype(compute_dtype)
    if padded_B != B:
        x_in = jnp.pad(x_in, ((0, padded_B - B), (0, 0)))

    out = pl.pallas_call(
        autoencoder_kernel,
        out_shape=jax.ShapeDtypeStruct((padded_B, _D_OUT), jnp.float32),
        grid_spec=pltpu.PrefetchScalarGridSpec(
            num_scalar_prefetch=0,
            grid=(padded_B // tb,),
            in_specs=[
                pl.BlockSpec((tb, _D_IN), lambda i: (i, 0)),               # x tile
                pl.BlockSpec((_PACK_ROWS, _PACK_COLS), lambda i: (0, 0)),  # packed params
            ],
            out_specs=pl.BlockSpec((tb, _D_OUT), lambda i: (i, 0)),
        ),
        compiler_params=pltpu.CompilerParams(
            dimension_semantics=("parallel",)),
    )(x_in, packed)

    return out[:B] if padded_B != B else out


def init_params(key):
    """Deterministic init mimicking torch.nn.Linear's U(-1/sqrt(fan_in), +1/sqrt(fan_in))."""
    dims = [(25, 16), (16, 9), (9, 16), (16, 25)]
    params = {}
    for idx, (fan_in, fan_out) in enumerate(dims, start=1):
        key, kw, kb = jax.random.split(key, 3)
        bound = 1.0 / jnp.sqrt(float(fan_in))
        params[f"w{idx}"] = jax.random.uniform(kw, (fan_in, fan_out), jnp.float32, -bound, bound)
        params[f"b{idx}"] = jax.random.uniform(kb, (1, fan_out), jnp.float32, -bound, bound)
    return params


def reference_forward(x, params):
    """Original (unfused) 4-linear forward, matching the PyTorch module literally."""
    h = jnp.maximum(x @ params["w1"] + params["b1"], 0.0)
    z = h @ params["w2"] + params["b2"]
    h = jnp.maximum(z @ params["w3"] + params["b3"], 0.0)
    return h @ params["w4"] + params["b4"]


def reference_forward_fused(x, fused):
    """Same fused math as the kernel, in plain JAX (shares the identical w23/b23 arrays)."""
    h1 = jnp.maximum(x @ fused["w1"] + fused["b1"], 0.0)
    h2 = jnp.maximum(h1 @ fused["w23"] + fused["b23"], 0.0)
    return h2 @ fused["w4"] + fused["b4"]


if __name__ == "__main__":
    key = jax.random.PRNGKey(0)
    key, kx = jax.random.split(key)

    B = 1024                                  # multi-tile batch: grid of 4 steps at tb=256
    x = jax.random.normal(kx, (B, _D_IN), jnp.float32)
    params = init_params(key)
    fused = fuse_params(params)

    out = autoencoder_forward(x, fused, tb=256)
    out = jax.block_until_ready(out)
    assert out.shape == (B, _D_OUT)

    # Tight check: kernel vs the identical (fused) math in plain JAX.
    ref_fused = reference_forward_fused(x, fused)
    assert jnp.allclose(out, ref_fused, atol=1e-5, rtol=1e-5)

    # Semantics check vs the original unfused 4-linear forward. The looser tolerance
    # only covers float reassociation of W2@W3 under the TPU's default (bf16-operand)
    # f32 matmul precision; the fusion is exact in real arithmetic.
    ref_orig = reference_forward(x, params)
    assert jnp.allclose(out, ref_orig, atol=2e-2, rtol=2e-2)

    print("KERNEL_OK")
</pallas_src>

<mosaic_0001>
module attributes {stable_mosaic.version = 11 : i64} {
  func.func @autoencoder_kernel(%arg0: i32, %arg1: memref<256x25xf32, #tpu.memory_space<vmem>>, %arg2: memref<64x32xf32, #tpu.memory_space<vmem>>, %arg3: memref<256x25xf32, #tpu.memory_space<vmem>>) attributes {dimension_semantics = [#tpu.dimension_semantics<parallel>], iteration_bounds = array<i64: 4>, scalar_prefetch = 0 : i64, scratch_operands = 0 : i64, tpu.core_type = #tpu.core_type<tc>, window_params = [{transform_indices = @transform_0, window_bounds = array<i64: 256, 25>}, {pipeline_mode = #tpu.pipeline_mode<synchronous>, transform_indices = @transform_1, window_bounds = array<i64: 64, 32>}, {transform_indices = @transform_2, window_bounds = array<i64: 256, 25>}]} {
    %c0 = arith.constant 0 : index
    %c0_0 = arith.constant 0 : index
    %0 = vector.load %arg1[%c0, %c0_0] : memref<256x25xf32, #tpu.memory_space<vmem>>, vector<256x25xf32>
    %c0_1 = arith.constant 0 : index
    %c0_2 = arith.constant 0 : index
    %1 = vector.load %arg2[%c0_1, %c0_2] : memref<64x32xf32, #tpu.memory_space<vmem>>, vector<25x16xf32>
    %c25 = arith.constant 25 : index
    %c0_3 = arith.constant 0 : index
    %2 = vector.load %arg2[%c25, %c0_3] : memref<64x32xf32, #tpu.memory_space<vmem>>, vector<1x16xf32>
    %c26 = arith.constant 26 : index
    %c0_4 = arith.constant 0 : index
    %3 = vector.load %arg2[%c26, %c0_4] : memref<64x32xf32, #tpu.memory_space<vmem>>, vector<16x16xf32>
    %c42 = arith.constant 42 : index
    %c0_5 = arith.constant 0 : index
    %4 = vector.load %arg2[%c42, %c0_5] : memref<64x32xf32, #tpu.memory_space<vmem>>, vector<1x16xf32>
    %c43 = arith.constant 43 : index
    %c0_6 = arith.constant 0 : index
    %5 = vector.load %arg2[%c43, %c0_6] : memref<64x32xf32, #tpu.memory_space<vmem>>, vector<16x25xf32>
    %c59 = arith.constant 59 : index
    %c0_7 = arith.constant 0 : index
    %6 = vector.load %arg2[%c59, %c0_7] : memref<64x32xf32, #tpu.memory_space<vmem>>, vector<1x25xf32>
    %cst = arith.constant dense<0.000000e+00> : vector<256x16xf32>
    %7 = tpu.matmul %0, %1, %cst {dimension_numbers = #tpu.dot_dimension_numbers<[1], [0], [0], [1], [0, 0, 1, 1], [], []>} : vector<256x25xf32>, vector<25x16xf32>, vector<256x16xf32> -> vector<256x16xf32>
    %8 = vector.broadcast %2 : vector<1x16xf32> to vector<256x16xf32>
    %9 = arith.addf %7, %8 : vector<256x16xf32>
    %cst_8 = arith.constant 0.000000e+00 : f32
    %10 = vector.broadcast %cst_8 : f32 to vector<256x16xf32>
    %11 = arith.maximumf %9, %10 : vector<256x16xf32>
    %cst_9 = arith.constant dense<0.000000e+00> : vector<256x16xf32>
    %12 = tpu.matmul %11, %3, %cst_9 {dimension_numbers = #tpu.dot_dimension_numbers<[1], [0], [0], [1], [0, 0, 1, 1], [], []>} : vector<256x16xf32>, vector<16x16xf32>, vector<256x16xf32> -> vector<256x16xf32>
    %13 = vector.broadcast %4 : vector<1x16xf32> to vector<256x16xf32>
    %14 = arith.addf %12, %13 : vector<256x16xf32>
    %cst_10 = arith.constant 0.000000e+00 : f32
    %15 = vector.broadcast %cst_10 : f32 to vector<256x16xf32>
    %16 = arith.maximumf %14, %15 : vector<256x16xf32>
    %cst_11 = arith.constant dense<0.000000e+00> : vector<256x25xf32>
    %17 = tpu.matmul %16, %5, %cst_11 {dimension_numbers = #tpu.dot_dimension_numbers<[1], [0], [0], [1], [0, 0, 1, 1], [], []>} : vector<256x16xf32>, vector<16x25xf32>, vector<256x25xf32> -> vector<256x25xf32>
    %18 = vector.broadcast %6 : vector<1x25xf32> to vector<256x25xf32>
    %19 = arith.addf %17, %18 : vector<256x25xf32>
    %c0_12 = arith.constant 0 : index
    %c0_13 = arith.constant 0 : index
    %20 = vector.load %arg3[%c0_12, %c0_13] : memref<256x25xf32, #tpu.memory_space<vmem>>, vector<256x25xf32>
    tpu.vector_store %arg3[%c0_12, %c0_13], %19 {strides = array<i32>} : memref<256x25xf32, #tpu.memory_space<vmem>>, vector<256x25xf32>,
    return
  }
  func.func @transform_0(%arg0: i32) -> (i32, i32) {
    %c0_i32 = arith.constant 0 : i32
    %c0_i32_0 = arith.constant 0 : i32
    return %arg0, %c0_i32 : i32, i32
  }
  func.func @transform_1(%arg0: i32) -> (i32, i32) {
    %c0_i32 = arith.constant 0 : i32
    %c0_i32_0 = arith.constant 0 : i32
    %c0_i32_1 = arith.constant 0 : i32
    return %c0_i32, %c0_i32_0 : i32, i32
  }
  func.func @transform_2(%arg0: i32) -> (i32, i32) {
    %c0_i32 = arith.constant 0 : i32
    %c0_i32_0 = arith.constant 0 : i32
    return %arg0, %c0_i32 : i32, i32
  }
}

</mosaic_0001>

<llo_original>
// kernel: tpu_custom_call.1
$region0: #{tpu_custom_call.1}
  #allocation0 [shape = 'u32[]', space=smem, size = 0x4, offset = 0x4, fixed_abs, tag = 'smem constant byte address 0x4 - core index']
  #allocation1 [shape = 'u32[144,128]{1,0:T(1,128)}', space=vmem, size = 0x12000, scoped, tag = 'internal scratch']
  %s0 = inlined_call_operand.vmem [shape: f32[1024,25], index: 0, kind: input, shape index: {}]
  %s1 = inlined_call_operand.vmem [shape: f32[64,32], index: 1, kind: input, shape index: {}]
  %s2 = inlined_call_operand.vmem [shape: f32[1024,25], index: 2, kind: output, shape index: {}]
  %s3 = sld [smem:[#allocation0]]
  $region41: #{tpu_custom_call.1} parent=0
    _
  %s5 = ssub.s32 1, %s3
  %s6 = scalar_select 0, %s5, %s3
  loop: start=0, step=1, limit=6
  $region2: #{tpu_custom_call.1} parent=0 // loop_pre_header
    _
  $region3: #{tpu_custom_call.1} parent=0 // loop_header
    %s8 = sphi 0, %s12
    %p9 = scmp.ge.s32.totalorder %s8, 6
    %s18 = sphi 0, %s20
    %s21 = sphi 0, %s18
    %s22 = sphi 0, %s21
    %s38 = sphi 0, %s22
    %s42 = sphi 0, %s42
    %s44 = sphi 0, %s42
    %s45 = sphi 0, %s44
    %s59 = sphi 0, %s45
    %s65 = sphi 0, %s67
    %s68 = sphi 0, %s65
    %s69 = sphi 0, %s68
    %s85 = sphi 0, %s69
  $region4: #{tpu_custom_call.1} parent=0 // loop_header_branch
    %11 = sbr.rel (%p9) target = $region8
  $region5: #{tpu_custom_call.1} parent=0 // loop_body
    %s13 = ssub.s32 %s8, 1
    %s14 = ssub.s32 %s8, 2
    %s15 = sadd.s32 %s8, 1
    %s16 = ssub.s32 %s8, %s15
    %p17 = scmp.eq.s32.totalorder %s16, 0
    %s19 = sadd.s32 %s18, 1
    %s20 = scalar_select %p17, %s18, %s19
    %p23 = pneg %p17
    %p24 = scmp.eq.s32.totalorder %s8, 3
    %p25 = por %p23, %p24
    %p26 = scmp.ne.s32.totalorder %s18, %s21
    %p27 = scmp.eq.s32.totalorder %s8, 0
    %p28 = por %p26, %p27
    %p29 = scmp.ne.s32.totalorder %s18, %s21
    %p30 = scmp.eq.s32.totalorder %s13, 3
    %p31 = por %p29, %p30
    %p32 = scmp.ne.s32.totalorder %s21, %s22
    %p33 = scmp.eq.s32.totalorder %s13, 0
    %p34 = por %p32, %p33
    %p35 = scmp.ne.s32.totalorder %s21, %s22
    %p36 = scmp.eq.s32.totalorder %s14, 3
    %p37 = por %p35, %p36
    %p39 = scmp.ne.s32.totalorder %s22, %s38
    %p40 = scmp.eq.s32.totalorder %s14, 0
    %p41 = por %p39, %p40
    %s43 = sadd.s32 %s42, 1
    %p46 = scmp.eq.s32.totalorder %s8, 3
    %p47 = scmp.ne.s32.totalorder %s42, %s44
    %p48 = scmp.eq.s32.totalorder %s8, 0
    %p49 = por %p47, %p48
    %p50 = scmp.ne.s32.totalorder %s42, %s44
    %p51 = scmp.eq.s32.totalorder %s13, 3
    %p52 = por %p50, %p51
    %p53 = scmp.ne.s32.totalorder %s44, %s45
    %p54 = scmp.eq.s32.totalorder %s13, 0
    %p55 = por %p53, %p54
    %p56 = scmp.ne.s32.totalorder %s44, %s45
    %p57 = scmp.eq.s32.totalorder %s14, 3
    %p58 = por %p56, %p57
    %p60 = scmp.ne.s32.totalorder %s45, %s59
    %p61 = scmp.eq.s32.totalorder %s14, 0
    %p62 = por %p60, %p61
    %s63 = ssub.s32 %s8, %s15
    %p64 = scmp.eq.s32.totalorder %s63, 0
    %s66 = sadd.s32 %s65, 1
    %s67 = scalar_select %p64, %s65, %s66
    %p70 = pneg %p64
    %p71 = scmp.eq.s32.totalorder %s8, 3
    %p72 = por %p70, %p71
    %p73 = scmp.ne.s32.totalorder %s65, %s68
    %p74 = scmp.eq.s32.totalorder %s8, 0
    %p75 = por %p73, %p74
    %p76 = scmp.ne.s32.totalorder %s65, %s68
    %p77 = scmp.eq.s32.totalorder %s13, 3
    %p78 = por %p76, %p77
    %p79 = scmp.ne.s32.totalorder %s68, %s69
    %p80 = scmp.eq.s32.totalorder %s13, 0
    %p81 = por %p79, %p80
    %p82 = scmp.ne.s32.totalorder %s68, %s69
    %p83 = scmp.eq.s32.totalorder %s14, 3
    %p84 = por %p82, %p83
    %p86 = scmp.ne.s32.totalorder %s69, %s85
    %p87 = scmp.eq.s32.totalorder %s14, 0
    %p88 = por %p86, %p87
    %p89 = scmp.le.s32.totalorder 1, %s8
    %p90 = scmp.lt.s32.totalorder %s8, 5
    %p91 = pnand %p89, %p90
    %p92 = pneg %p91
    // Predicated region
    $region9: #{tpu_custom_call.1} parent=5 // pred_check
      _
    $region10: #{tpu_custom_call.1} parent=5 // pred_check_branch
      %94 = sbr.rel (%p91) target = $region12
    $region11: #{tpu_custom_call.1} parent=5 // pred_region
      %s95 = ssub.s32 %s8, 1
      // Predicated region
      $region13: #{tpu_custom_call.1} parent=11 // pred_check
        %p96 = pneg %p55
      $region14: #{tpu_custom_call.1} parent=11 // pred_check_branch
        %98 = sbr.rel (%p96) target = $region16
      $region15: #{tpu_custom_call.1} parent=11 // pred_region
        _
      $region16: #{tpu_custom_call.1} parent=11 // pred_fallthru
        _
    $region12: #{tpu_custom_call.1} parent=5 // pred_fallthru
      _
    %p99 = scmp.lt.s32.totalorder %s8, 4
    // Predicated region
    $region17: #{tpu_custom_call.1} parent=5 // pred_check
      %p100 = pneg %p99
    $region18: #{tpu_custom_call.1} parent=5 // pred_check_branch
      %102 = sbr.rel (%p100) target = $region20
    $region19: #{tpu_custom_call.1} parent=5 // pred_region
      // Predicated region
      $region21: #{tpu_custom_call.1} parent=19 // pred_check
        %p103 = pneg %p28
      $region22: #{tpu_custom_call.1} parent=19 // pred_check_branch
        %105 = sbr.rel (%p103) target = $region24
      $region23: #{tpu_custom_call.1} parent=19 // pred_region
        %s106 = smul.u32 32, %s8
        %p107 = scmp.lt.s32.totalorder %s106, 127
        %s108 = scalar_select %p107, %s106, 127
        %s109 = smul.addr %s108, 8
        %s110 = scalar_lea.vmem %s0, %s109
        %s111 = smul.u32 32, %s8
      $region24: #{tpu_custom_call.1} parent=19 // pred_fallthru
        _
    $region20: #{tpu_custom_call.1} parent=5 // pred_fallthru
      _
    %p112 = scmp.le.s32.totalorder 1, %s8
    %p113 = scmp.lt.s32.totalorder %s8, 5
    %p114 = pnand %p112, %p113
    %p115 = pneg %p114
    // Predicated region
    $region25: #{tpu_custom_call.1} parent=5 // pred_check
      _
    $region26: #{tpu_custom_call.1} parent=5 // pred_check_branch
      %117 = sbr.rel (%p114) target = $region28
    $region27: #{tpu_custom_call.1} parent=5 // pred_region
      %s118 = ssub.s32 %s8, 1
      %s119 = smul.u32 32, %s13
      %p120 = scmp.lt.s32.totalorder %s119, 127
      %s121 = scalar_select %p120, %s119, 127
      %s122 = smul.addr %s121, 8
      %s123 = scalar_lea.vmem %s0, %s122
      %p124 = pneg %p34
      %p125 = pneg %p31
      %p126 = pneg %p55
      %p127 = pneg %p52
      %p128 = pneg %p81
      %p129 = pneg %p78
      %s130 = smul.u32 32, %s13
      %p131 = scmp.lt.s32.totalorder %s130, 127
      %s132 = scalar_select %p131, %s130, 127
      %s133 = smul.addr %s132, 8
      %s134 = scalar_lea.vmem %s2, %s133
      %s135 = smul.u32 32, %s13
      %p136 = scmp.lt.s32.totalorder %s135, 127
      %s137 = scalar_select %p136, %s135, 127
      %s138 = smul.addr %s137, 8
      %s139 = scalar_lea.vmem %s0, %s138
      %s140 = smul.u32 32, %s13
      %s141 = smul.u32 32, %s13
      %p142 = scmp.lt.s32.totalorder %s141, 127
      %s143 = scalar_select %p142, %s141, 127
      %s144 = smul.addr %s143, 8
      %s145 = scalar_lea.vmem %s2, %s144
      %s146 = smul.u32 32, %s13
      %v147 = vld [vmem:[%s139] sm:$0xff]
      %v148 = vld [vmem:[%s139 + $0x8] sm:$0xff]
      %v149 = vld [vmem:[%s139 + $0x10] sm:$0xff]
      %v150 = vld [vmem:[%s139 + $0x18] sm:$0xff]
      %v151 = vld [vmem:[%s139 + $0x20] sm:$0xff]
      %v152 = vld [vmem:[%s139 + $0x28] sm:$0xff]
      %v153 = vld [vmem:[%s139 + $0x30] sm:$0xff]
      %v154 = vld [vmem:[%s139 + $0x38] sm:$0xff]
      %v155 = vld [vmem:[%s139 + $0x40] sm:$0xff]
      %v156 = vld [vmem:[%s139 + $0x48] sm:$0xff]
      %v157 = vld [vmem:[%s139 + $0x50] sm:$0xff]
      %v158 = vld [vmem:[%s139 + $0x58] sm:$0xff]
      %v159 = vld [vmem:[%s139 + $0x60] sm:$0xff]
      %v160 = vld [vmem:[%s139 + $0x68] sm:$0xff]
      %v161 = vld [vmem:[%s139 + $0x70] sm:$0xff]
      %v162 = vld [vmem:[%s139 + $0x78] sm:$0xff]
      %v163 = vld [vmem:[%s139 + $0x80] sm:$0xff]
      %v164 = vld [vmem:[%s139 + $0x88] sm:$0xff]
      %v165 = vld [vmem:[%s139 + $0x90] sm:$0xff]
      %v166 = vld [vmem:[%s139 + $0x98] sm:$0xff]
      %v167 = vld [vmem:[%s139 + $0xa0] sm:$0xff]
      %v168 = vld [vmem:[%s139 + $0xa8] sm:$0xff]
      %v169 = vld [vmem:[%s139 + $0xb0] sm:$0xff]
      %v170 = vld [vmem:[%s139 + $0xb8] sm:$0xff]
      %v171 = vld [vmem:[%s139 + $0xc0] sm:$0xff]
      %v172 = vld [vmem:[%s139 + $0xc8] sm:$0xff]
      %v173 = vld [vmem:[%s139 + $0xd0] sm:$0xff]
      %v174 = vld [vmem:[%s139 + $0xd8] sm:$0xff]
      %v175 = vld [vmem:[%s139 + $0xe0] sm:$0xff]
      %v176 = vld [vmem:[%s139 + $0xe8] sm:$0xff]
      %v177 = vld [vmem:[%s139 + $0xf0] sm:$0xff]
      %v178 = vld [vmem:[%s139 + $0xf8] sm:$0xff]
      %v179 = vld [vmem:[%s1] sm:$0xff]
      %v180 = vld [vmem:[%s1 + $0x8] sm:$0xff]
      %v181 = vld [vmem:[%s1 + $0x10] sm:$0xff]
      %v182 = vld [vmem:[%s1 + $0x18] sm:$0x1]
      %v183 = vld [vmem:[%s1 + $0x19] sm:$0x1]
      %v184 = vld [vmem:[%s1 + $0x1a] sm:$0xff]
      %v185 = vld [vmem:[%s1 + $0x22] sm:$0xff]
      %v186 = vld [vmem:[%s1 + $0x2a] sm:$0x1]
      %v187 = vld [vmem:[%s1 + $0x2b] sm:$0xff]
      %v188 = vld [vmem:[%s1 + $0x33] sm:$0xff]
      %v189 = vld [vmem:[%s1 + $0x3b] sm:$0x1]
      %v190 = vlaneseq
      %v191 = vshrl.u32 %v190, 7
      %v192 = vsub.s32 0, %v191
      %v193 = vrot.slane %v183, %v192
      %vm194 = vcmask 203776
      %v196 = vsel %vm194, %v147, 0
      %v199 = vsel %vm194, %v148, 0
      %v202 = vsel %vm194, %v149, 0
      %v205 = vsel %vm194, %v150, 0
      %v208 = vsel %vm194, %v151, 0
      %v211 = vsel %vm194, %v152, 0
      %v214 = vsel %vm194, %v153, 0
      %v217 = vsel %vm194, %v154, 0
      %v220 = vsel %vm194, %v155, 0
      %v223 = vsel %vm194, %v156, 0
      %v226 = vsel %vm194, %v157, 0
      %v229 = vsel %vm194, %v158, 0
      %v232 = vsel %vm194, %v159, 0
      %v235 = vsel %vm194, %v160, 0
      %v238 = vsel %vm194, %v161, 0
      %v241 = vsel %vm194, %v162, 0
      %v244 = vsel %vm194, %v163, 0
      %v247 = vsel %vm194, %v164, 0
      %v250 = vsel %vm194, %v165, 0
      %v253 = vsel %vm194, %v166, 0
      %v256 = vsel %vm194, %v167, 0
      %v259 = vsel %vm194, %v168, 0
      %v262 = vsel %vm194, %v169, 0
      %v265 = vsel %vm194, %v170, 0
      %v268 = vsel %vm194, %v171, 0
      %v271 = vsel %vm194, %v172, 0
      %v274 = vsel %vm194, %v173, 0
      %v277 = vsel %vm194, %v174, 0
      %v280 = vsel %vm194, %v175, 0
      %v283 = vsel %vm194, %v176, 0
      %v286 = vsel %vm194, %v177, 0
      %v289 = vsel %vm194, %v178, 0
      %vm291 = vcmask 1040384
      %v293 = vsel %vm291, %v182, 0
      %295 = vmatprep.subr.mxu0 0.0
      %296 = vmatpush1.msra.mxu0 %v179
      %297 = vmatprep.subr.mxu0 0.0
      %298 = vmatpush1.msra.mxu0 %v180
      %299 = vmatprep.subr.mxu0 0.0
      %300 = vmatpush1.msra.mxu0 %v181
      %301 = vmatprep.subr.mxu0 0.0
      %302 = vmatpush1.msra.mxu0 %v293
      %303 = vmatprep.subr.mxu0 0.0
      %304 = vmatpush1.msra.mxu0 0.0
      %305 = vmatprep.subr.mxu0 0.0
      %306 = vmatpush1.msra.mxu0 0.0
      %307 = vmatprep.subr.mxu0 0.0
      %308 = vmatpush1.msra.mxu0 0.0
      %309 = vmatprep.subr.mxu0 0.0
      %310 = vmatpush1.msra.mxu0 0.0
      %311 = vmatprep.subr.mxu0 0.0
      %312 = vmatpush1.msra.mxu0 0.0
      %313 = vmatprep.subr.mxu0 0.0
      %314 = vmatpush1.msra.mxu0 0.0
      %315 = vmatprep.subr.mxu0 0.0
      %316 = vmatpush1.msra.mxu0 0.0
      %317 = vmatprep.subr.mxu0 0.0
      %318 = vmatpush1.msra.mxu0 0.0
      %319 = vmatprep.subr.mxu0 0.0
      %320 = vmatpush1.msra.mxu0 0.0
      %321 = vmatprep.subr.mxu0 0.0
      %322 = vmatpush1.msra.mxu0 0.0
      %323 = vmatprep.subr.mxu0 0.0
      %324 = vmatpush1.msra.mxu0 0.0
      %325 = vmatprep.subr.mxu0 0.0
      %326 = vmatpush1.msra.mxu0 0.0
      %327 = vmatprep.subr.mxu0 0.0
      %328 = vmatpush1.msra.mxu0 0.0
      %329 = vmatprep.subr.mxu0 0.0
      %330 = vmatpush1.msra.mxu0 0.0
      %331 = vmatprep.subr.mxu0 0.0
      %332 = vmatpush1.msra.mxu0 0.0
      %333 = vmatprep.subr.mxu0 0.0
      %334 = vmatpush1.msra.mxu0 0.0
      %335 = vmatprep.subr.mxu0 0.0
      %336 = vmatpush1.msra.mxu0 0.0
      %337 = vmatprep.subr.mxu0 0.0
      %338 = vmatpush1.msra.mxu0 0.0
      %339 = vmatprep.subr.mxu0 0.0
      %340 = vmatpush1.msra.mxu0 0.0
      %341 = vmatprep.subr.mxu0 0.0
      %342 = vmatpush1.msra.mxu0 0.0
      %343 = vmatprep.subr.mxu0 0.0
      %344 = vmatpush1.msra.mxu0 0.0
      %345 = vmatprep.subr.mxu0 0.0
      %346 = vmatpush1.msra.mxu0 0.0
      %347 = vmatprep.subr.mxu0 0.0
      %348 = vmatpush1.msra.mxu0 0.0
      %349 = vmatprep.subr.mxu0 0.0
      %350 = vmatpush1.msra.mxu0 0.0
      %351 = vmatprep.subr.mxu0 0.0
      %352 = vmatpush1.msra.mxu0 0.0
      %353 = vmatprep.subr.mxu0 0.0
      %354 = vmatpush1.msra.mxu0 0.0
      %355 = vmatprep.subr.mxu0 0.0
      %356 = vmatpush1.msra.mxu0 0.0
      %357 = vmatprep.subr.mxu0 0.0
      %358 = vmatpush1.msra.mxu0 0.0
      %359 = vmatprep.mubr.f32.mxu0 0.0
      %360 = vmatmul.mubr.f32.gmra.mrb[0].mxu0 %v196
      %v361 = vpop.f32.mrb[0].mxu0
      %v362 = vadd.f32 %v193, %v361
      %v363 = vpop.f32.mrb[0].mxu0
      %364 = vmatprep.mubr.f32.mxu0 0.0
      %365 = vmatmul.mubr.f32.gmra.mrb[0].mxu0 %v199
      %v366 = vpop.f32.mrb[0].mxu0
      %v367 = vadd.f32 %v193, %v366
      %v368 = vpop.f32.mrb[0].mxu0
      %369 = vmatprep.mubr.f32.mxu0 0.0
      %370 = vmatmul.mubr.f32.gmra.mrb[0].mxu0 %v202
      %v371 = vpop.f32.mrb[0].mxu0
      %v372 = vadd.f32 %v193, %v371
      %v373 = vpop.f32.mrb[0].mxu0
      %374 = vmatprep.mubr.f32.mxu0 0.0
      %375 = vmatmul.mubr.f32.gmra.mrb[0].mxu0 %v205
      %v376 = vpop.f32.mrb[0].mxu0
      %v377 = vadd.f32 %v193, %v376
      %v378 = vpop.f32.mrb[0].mxu0
      %379 = vmatprep.mubr.f32.mxu0 0.0
      %380 = vmatmul.mubr.f32.gmra.mrb[0].mxu0 %v208
      %v381 = vpop.f32.mrb[0].mxu0
      %v382 = vadd.f32 %v193, %v381
      %v383 = vpop.f32.mrb[0].mxu0
      %384 = vmatprep.mubr.f32.mxu0 0.0
      %385 = vmatmul.mubr.f32.gmra.mrb[0].mxu0 %v211
      %v386 = vpop.f32.mrb[0].mxu0
      %v387 = vadd.f32 %v193, %v386
      %v388 = vpop.f32.mrb[0].mxu0
      %389 = vmatprep.mubr.f32.mxu0 0.0
      %390 = vmatmul.mubr.f32.gmra.mrb[0].mxu0 %v214
      %v391 = vpop.f32.mrb[0].mxu0
      %v392 = vadd.f32 %v193, %v391
      %v393 = vpop.f32.mrb[0].mxu0
      %394 = vmatprep.mubr.f32.mxu0 0.0
      %395 = vmatmul.mubr.f32.gmra.mrb[0].mxu0 %v217
      %v396 = vpop.f32.mrb[0].mxu0
      %v397 = vadd.f32 %v193, %v396
      %v398 = vpop.f32.mrb[0].mxu0
      %399 = vmatprep.mubr.f32.mxu0 0.0
      %400 = vmatmul.mubr.f32.gmra.mrb[0].mxu0 %v220
      %v401 = vpop.f32.mrb[0].mxu0
      %v402 = vadd.f32 %v193, %v401
      %v403 = vpop.f32.mrb[0].mxu0
      %404 = vmatprep.mubr.f32.mxu0 0.0
      %405 = vmatmul.mubr.f32.gmra.mrb[0].mxu0 %v223
      %v406 = vpop.f32.mrb[0].mxu0
      %v407 = vadd.f32 %v193, %v406
      %v408 = vpop.f32.mrb[0].mxu0
      %409 = vmatprep.mubr.f32.mxu0 0.0
      %410 = vmatmul.mubr.f32.gmra.mrb[0].mxu0 %v226
      %v411 = vpop.f32.mrb[0].mxu0
      %v412 = vadd.f32 %v193, %v411
      %v413 = vpop.f32.mrb[0].mxu0
      %414 = vmatprep.mubr.f32.mxu0 0.0
      %415 = vmatmul.mubr.f32.gmra.mrb[0].mxu0 %v229
      %v416 = vpop.f32.mrb[0].mxu0
      %v417 = vadd.f32 %v193, %v416
      %v418 = vpop.f32.mrb[0].mxu0
      %419 = vmatprep.mubr.f32.mxu0 0.0
      %420 = vmatmul.mubr.f32.gmra.mrb[0].mxu0 %v232
      %v421 = vpop.f32.mrb[0].mxu0
      %v422 = vadd.f32 %v193, %v421
      %v423 = vpop.f32.mrb[0].mxu0
      %424 = vmatprep.mubr.f32.mxu0 0.0
      %425 = vmatmul.mubr.f32.gmra.mrb[0].mxu0 %v235
      %v426 = vpop.f32.mrb[0].mxu0
      %v427 = vadd.f32 %v193, %v426
      %v428 = vpop.f32.mrb[0].mxu0
      %429 = vmatprep.mubr.f32.mxu0 0.0
      %430 = vmatmul.mubr.f32.gmra.mrb[0].mxu0 %v238
      %v431 = vpop.f32.mrb[0].mxu0
      %v432 = vadd.f32 %v193, %v431
      %v433 = vpop.f32.mrb[0].mxu0
      %434 = vmatprep.mubr.f32.mxu0 0.0
      %435 = vmatmul.mubr.f32.gmra.mrb[0].mxu0 %v241
      %v436 = vpop.f32.mrb[0].mxu0
      %v437 = vadd.f32 %v193, %v436
      %v438 = vpop.f32.mrb[0].mxu0
      %439 = vmatprep.mubr.f32.mxu0 0.0
      %440 = vmatmul.mubr.f32.gmra.mrb[0].mxu0 %v244
      %v441 = vpop.f32.mrb[0].mxu0
      %v442 = vadd.f32 %v193, %v441
      %v443 = vpop.f32.mrb[0].mxu0
      %444 = vmatprep.mubr.f32.mxu0 0.0
      %445 = vmatmul.mubr.f32.gmra.mrb[0].mxu0 %v247
      %v446 = vpop.f32.mrb[0].mxu0
      %v447 = vadd.f32 %v193, %v446
      %v448 = vpop.f32.mrb[0].mxu0
      %449 = vmatprep.mubr.f32.mxu0 0.0
      %450 = vmatmul.mubr.f32.gmra.mrb[0].mxu0 %v250
      %v451 = vpop.f32.mrb[0].mxu0
      %v452 = vadd.f32 %v193, %v451
      %v453 = vpop.f32.mrb[0].mxu0
      %454 = vmatprep.mubr.f32.mxu0 0.0
      %455 = vmatmul.mubr.f32.gmra.mrb[0].mxu0 %v253
      %v456 = vpop.f32.mrb[0].mxu0
      %v457 = vadd.f32 %v193, %v456
      %v458 = vpop.f32.mrb[0].mxu0
      %459 = vmatprep.mubr.f32.mxu0 0.0
      %460 = vmatmul.mubr.f32.gmra.mrb[0].mxu0 %v256
      %v461 = vpop.f32.mrb[0].mxu0
      %v462 = vadd.f32 %v193, %v461
      %v463 = vpop.f32.mrb[0].mxu0
      %464 = vmatprep.mubr.f32.mxu0 0.0
      %465 = vmatmul.mubr.f32.gmra.mrb[0].mxu0 %v259
      %v466 = vpop.f32.mrb[0].mxu0
      %v467 = vadd.f32 %v193, %v466
      %v468 = vpop.f32.mrb[0].mxu0
      %469 = vmatprep.mubr.f32.mxu0 0.0
      %470 = vmatmul.mubr.f32.gmra.mrb[0].mxu0 %v262
      %v471 = vpop.f32.mrb[0].mxu0
      %v472 = vadd.f32 %v193, %v471
      %v473 = vpop.f32.mrb[0].mxu0
      %474 = vmatprep.mubr.f32.mxu0 0.0
      %475 = vmatmul.mubr.f32.gmra.mrb[0].mxu0 %v265
      %v476 = vpop.f32.mrb[0].mxu0
      %v477 = vadd.f32 %v193, %v476
      %v478 = vpop.f32.mrb[0].mxu0
      %479 = vmatprep.mubr.f32.mxu0 0.0
      %480 = vmatmul.mubr.f32.gmra.mrb[0].mxu0 %v268
      %v481 = vpop.f32.mrb[0].mxu0
      %v482 = vadd.f32 %v193, %v481
      %v483 = vpop.f32.mrb[0].mxu0
      %484 = vmatprep.mubr.f32.mxu0 0.0
      %485 = vmatmul.mubr.f32.gmra.mrb[0].mxu0 %v271
      %v486 = vpop.f32.mrb[0].mxu0
      %v487 = vadd.f32 %v193, %v486
      %v488 = vpop.f32.mrb[0].mxu0
      %489 = vmatprep.mubr.f32.mxu0 0.0
      %490 = vmatmul.mubr.f32.gmra.mrb[0].mxu0 %v274
      %v491 = vpop.f32.mrb[0].mxu0
      %v492 = vadd.f32 %v193, %v491
      %v493 = vpop.f32.mrb[0].mxu0
      %494 = vmatprep.mubr.f32.mxu0 0.0
      %495 = vmatmul.mubr.f32.gmra.mrb[0].mxu0 %v277
      %v496 = vpop.f32.mrb[0].mxu0
      %v497 = vadd.f32 %v193, %v496
      %v498 = vpop.f32.mrb[0].mxu0
      %499 = vmatprep.mubr.f32.mxu0 0.0
      %500 = vmatmul.mubr.f32.gmra.mrb[0].mxu0 %v280
      %v501 = vpop.f32.mrb[0].mxu0
      %v502 = vadd.f32 %v193, %v501
      %v503 = vpop.f32.mrb[0].mxu0
      %504 = vmatprep.mubr.f32.mxu0 0.0
      %505 = vmatmul.mubr.f32.gmra.mrb[0].mxu0 %v283
      %v506 = vpop.f32.mrb[0].mxu0
      %v507 = vadd.f32 %v193, %v506
      %v508 = vpop.f32.mrb[0].mxu0
      %509 = vmatprep.mubr.f32.mxu0 0.0
      %510 = vmatmul.mubr.f32.gmra.mrb[0].mxu0 %v286
      %v511 = vpop.f32.mrb[0].mxu0
      %v512 = vadd.f32 %v193, %v511
      %v513 = vpop.f32.mrb[0].mxu0
      %514 = vmatprep.mubr.f32.mxu0 0.0
      %515 = vmatmul.mubr.f32.gmra.mrb[0].mxu0 %v289
      %v516 = vpop.f32.mrb[0].mxu0
      %v517 = vadd.f32 %v193, %v516
      %v518 = vpop.f32.mrb[0].mxu0
      %519 = vdwg.mxu0
      %v520 = vmax.f32 %v362, 0.0
      %v521 = vmax.f32 %v367, 0.0
      %v522 = vmax.f32 %v372, 0.0
      %v523 = vmax.f32 %v377, 0.0
      %v524 = vmax.f32 %v382, 0.0
      %v525 = vmax.f32 %v387, 0.0
      %v526 = vmax.f32 %v392, 0.0
      %v527 = vmax.f32 %v397, 0.0
      %v528 = vmax.f32 %v402, 0.0
      %v529 = vmax.f32 %v407, 0.0
      %v530 = vmax.f32 %v412, 0.0
      %v531 = vmax.f32 %v417, 0.0
      %v532 = vmax.f32 %v422, 0.0
      %v533 = vmax.f32 %v427, 0.0
      %v534 = vmax.f32 %v432, 0.0
      %v535 = vmax.f32 %v437, 0.0
      %v536 = vmax.f32 %v442, 0.0
      %v537 = vmax.f32 %v447, 0.0
      %v538 = vmax.f32 %v452, 0.0
      %v539 = vmax.f32 %v457, 0.0
      %v540 = vmax.f32 %v462, 0.0
      %v541 = vmax.f32 %v467, 0.0
      %v542 = vmax.f32 %v472, 0.0
      %v543 = vmax.f32 %v477, 0.0
      %v544 = vmax.f32 %v482, 0.0
      %v545 = vmax.f32 %v487, 0.0
      %v546 = vmax.f32 %v492, 0.0
      %v547 = vmax.f32 %v497, 0.0
      %v548 = vmax.f32 %v502, 0.0
      %v549 = vmax.f32 %v507, 0.0
      %v550 = vmax.f32 %v512, 0.0
      %v551 = vmax.f32 %v517, 0.0
      %v552 = vlaneseq
      %v553 = vshrl.u32 %v552, 7
      %v554 = vsub.s32 0, %v553
      %v555 = vrot.slane %v186, %v554
      %vm556 = vcmask 130048
      %v558 = vsel %vm556, %v520, 0
      %v561 = vsel %vm556, %v521, 0
      %v564 = vsel %vm556, %v522, 0
      %v567 = vsel %vm556, %v523, 0
      %v570 = vsel %vm556, %v524, 0
      %v573 = vsel %vm556, %v525, 0
      %v576 = vsel %vm556, %v526, 0
      %v579 = vsel %vm556, %v527, 0
      %v582 = vsel %vm556, %v528, 0
      %v585 = vsel %vm556, %v529, 0
      %v588 = vsel %vm556, %v530, 0
      %v591 = vsel %vm556, %v531, 0
      %v594 = vsel %vm556, %v532, 0
      %v597 = vsel %vm556, %v533, 0
      %v600 = vsel %vm556, %v534, 0
      %v603 = vsel %vm556, %v535, 0
      %v606 = vsel %vm556, %v536, 0
      %v609 = vsel %vm556, %v537, 0
      %v612 = vsel %vm556, %v538, 0
      %v615 = vsel %vm556, %v539, 0
      %v618 = vsel %vm556, %v540, 0
      %v621 = vsel %vm556, %v541, 0
      %v624 = vsel %vm556, %v542, 0
      %v627 = vsel %vm556, %v543, 0
      %v630 = vsel %vm556, %v544, 0
      %v633 = vsel %vm556, %v545, 0
      %v636 = vsel %vm556, %v546, 0
      %v639 = vsel %vm556, %v547, 0
      %v642 = vsel %vm556, %v548, 0
      %v645 = vsel %vm556, %v549, 0
      %v648 = vsel %vm556, %v550, 0
      %v651 = vsel %vm556, %v551, 0
      %653 = vmatprep.subr.mxu0 0.0
      %654 = vmatpush1.msra.mxu0 %v184
      %655 = vmatprep.subr.mxu0 0.0
      %656 = vmatpush1.msra.mxu0 %v185
      %657 = vmatprep.subr.mxu0 0.0
      %658 = vmatpush1.msra.mxu0 0.0
      %659 = vmatprep.subr.mxu0 0.0
      %660 = vmatpush1.msra.mxu0 0.0
      %661 = vmatprep.subr.mxu0 0.0
      %662 = vmatpush1.msra.mxu0 0.0
      %663 = vmatprep.subr.mxu0 0.0
      %664 = vmatpush1.msra.mxu0 0.0
      %665 = vmatprep.subr.mxu0 0.0
      %666 = vmatpush1.msra.mxu0 0.0
      %667 = vmatprep.subr.mxu0 0.0
      %668 = vmatpush1.msra.mxu0 0.0
      %669 = vmatprep.subr.mxu0 0.0
      %670 = vmatpush1.msra.mxu0 0.0
      %671 = vmatprep.subr.mxu0 0.0
      %672 = vmatpush1.msra.mxu0 0.0
      %673 = vmatprep.subr.mxu0 0.0
      %674 = vmatpush1.msra.mxu0 0.0
      %675 = vmatprep.subr.mxu0 0.0
      %676 = vmatpush1.msra.mxu0 0.0
      %677 = vmatprep.subr.mxu0 0.0
      %678 = vmatpush1.msra.mxu0 0.0
      %679 = vmatprep.subr.mxu0 0.0
      %680 = vmatpush1.msra.mxu0 0.0
      %681 = vmatprep.subr.mxu0 0.0
      %682 = vmatpush1.msra.mxu0 0.0
      %683 = vmatprep.subr.mxu0 0.0
      %684 = vmatpush1.msra.mxu0 0.0
      %685 = vmatprep.subr.mxu0 0.0
      %686 = vmatpush1.msra.mxu0 0.0
      %687 = vmatprep.subr.mxu0 0.0
      %688 = vmatpush1.msra.mxu0 0.0
      %689 = vmatprep.subr.mxu0 0.0
      %690 = vmatpush1.msra.mxu0 0.0
      %691 = vmatprep.subr.mxu0 0.0
      %692 = vmatpush1.msra.mxu0 0.0
      %693 = vmatprep.subr.mxu0 0.0
      %694 = vmatpush1.msra.mxu0 0.0
      %695 = vmatprep.subr.mxu0 0.0
      %696 = vmatpush1.msra.mxu0 0.0
      %697 = vmatprep.subr.mxu0 0.0
      %698 = vmatpush1.msra.mxu0 0.0
      %699 = vmatprep.subr.mxu0 0.0
      %700 = vmatpush1.msra.mxu0 0.0
      %701 = vmatprep.subr.mxu0 0.0
      %702 = vmatpush1.msra.mxu0 0.0
      %703 = vmatprep.subr.mxu0 0.0
      %704 = vmatpush1.msra.mxu0 0.0
      %705 = vmatprep.subr.mxu0 0.0
      %706 = vmatpush1.msra.mxu0 0.0
      %707 = vmatprep.subr.mxu0 0.0
      %708 = vmatpush1.msra.mxu0 0.0
      %709 = vmatprep.subr.mxu0 0.0
      %710 = vmatpush1.msra.mxu0 0.0
      %711 = vmatprep.subr.mxu0 0.0
      %712 = vmatpush1.msra.mxu0 0.0
      %713 = vmatprep.subr.mxu0 0.0
      %714 = vmatpush1.msra.mxu0 0.0
      %715 = vmatprep.subr.mxu0 0.0
      %716 = vmatpush1.msra.mxu0 0.0
      %717 = vmatprep.mubr.f32.mxu0 0.0
      %718 = vmatmul.mubr.f32.gmra.mrb[0].mxu0 %v558
      %v719 = vpop.f32.mrb[0].mxu0
      %v720 = vadd.f32 %v555, %v719
      %v721 = vpop.f32.mrb[0].mxu0
      %722 = vmatprep.mubr.f32.mxu0 0.0
      %723 = vmatmul.mubr.f32.gmra.mrb[0].mxu0 %v561
      %v724 = vpop.f32.mrb[0].mxu0
      %v725 = vadd.f32 %v555, %v724
      %v726 = vpop.f32.mrb[0].mxu0
      %727 = vmatprep.mubr.f32.mxu0 0.0
      %728 = vmatmul.mubr.f32.gmra.mrb[0].mxu0 %v564
      %v729 = vpop.f32.mrb[0].mxu0
      %v730 = vadd.f32 %v555, %v729
      %v731 = vpop.f32.mrb[0].mxu0
      %732 = vmatprep.mubr.f32.mxu0 0.0
      %733 = vmatmul.mubr.f32.gmra.mrb[0].mxu0 %v567
      %v734 = vpop.f32.mrb[0].mxu0
      %v735 = vadd.f32 %v555, %v734
      %v736 = vpop.f32.mrb[0].mxu0
      %737 = vmatprep.mubr.f32.mxu0 0.0
      %738 = vmatmul.mubr.f32.gmra.mrb[0].mxu0 %v570
      %v739 = vpop.f32.mrb[0].mxu0
      %v740 = vadd.f32 %v555, %v739
      %v741 = vpop.f32.mrb[0].mxu0
      %742 = vmatprep.mubr.f32.mxu0 0.0
      %743 = vmatmul.mubr.f32.gmra.mrb[0].mxu0 %v573
      %v744 = vpop.f32.mrb[0].mxu0
      %v745 = vadd.f32 %v555, %v744
      %v746 = vpop.f32.mrb[0].mxu0
      %747 = vmatprep.mubr.f32.mxu0 0.0
      %748 = vmatmul.mubr.f32.gmra.mrb[0].mxu0 %v576
      %v749 = vpop.f32.mrb[0].mxu0
      %v750 = vadd.f32 %v555, %v749
      %v751 = vpop.f32.mrb[0].mxu0
      %752 = vmatprep.mubr.f32.mxu0 0.0
      %753 = vmatmul.mubr.f32.gmra.mrb[0].mxu0 %v579
      %v754 = vpop.f32.mrb[0].mxu0
      %v755 = vadd.f32 %v555, %v754
      %v756 = vpop.f32.mrb[0].mxu0
      %757 = vmatprep.mubr.f32.mxu0 0.0
      %758 = vmatmul.mubr.f32.gmra.mrb[0].mxu0 %v582
      %v759 = vpop.f32.mrb[0].mxu0
      %v760 = vadd.f32 %v555, %v759
      %v761 = vpop.f32.mrb[0].mxu0
      %762 = vmatprep.mubr.f32.mxu0 0.0
      %763 = vmatmul.mubr.f32.gmra.mrb[0].mxu0 %v585
      %v764 = vpop.f32.mrb[0].mxu0
      %v765 = vadd.f32 %v555, %v764
      %v766 = vpop.f32.mrb[0].mxu0
      %767 = vmatprep.mubr.f32.mxu0 0.0
      %768 = vmatmul.mubr.f32.gmra.mrb[0].mxu0 %v588
      %v769 = vpop.f32.mrb[0].mxu0
      %v770 = vadd.f32 %v555, %v769
      %v771 = vpop.f32.mrb[0].mxu0
      %772 = vmatprep.mubr.f32.mxu0 0.0
      %773 = vmatmul.mubr.f32.gmra.mrb[0].mxu0 %v591
      %v774 = vpop.f32.mrb[0].mxu0
      %v775 = vadd.f32 %v555, %v774
      %v776 = vpop.f32.mrb[0].mxu0
      %777 = vmatprep.mubr.f32.mxu0 0.0
      %778 = vmatmul.mubr.f32.gmra.mrb[0].mxu0 %v594
      %v779 = vpop.f32.mrb[0].mxu0
      %v780 = vadd.f32 %v555, %v779
      %v781 = vpop.f32.mrb[0].mxu0
      %782 = vmatprep.mubr.f32.mxu0 0.0
      %783 = vmatmul.mubr.f32.gmra.mrb[0].mxu0 %v597
      %v784 = vpop.f32.mrb[0].mxu0
      %v785 = vadd.f32 %v555, %v784
      %v786 = vpop.f32.mrb[0].mxu0
      %787 = vmatprep.mubr.f32.mxu0 0.0
      %788 = vmatmul.mubr.f32.gmra.mrb[0].mxu0 %v600
      %v789 = vpop.f32.mrb[0].mxu0
      %v790 = vadd.f32 %v555, %v789
      %v791 = vpop.f32.mrb[0].mxu0
      %792 = vmatprep.mubr.f32.mxu0 0.0
      %793 = vmatmul.mubr.f32.gmra.mrb[0].mxu0 %v603
      %v794 = vpop.f32.mrb[0].mxu0
      %v795 = vadd.f32 %v555, %v794
      %v796 = vpop.f32.mrb[0].mxu0
      %797 = vmatprep.mubr.f32.mxu0 0.0
      %798 = vmatmul.mubr.f32.gmra.mrb[0].mxu0 %v606
      %v799 = vpop.f32.mrb[0].mxu0
      %v800 = vadd.f32 %v555, %v799
      %v801 = vpop.f32.mrb[0].mxu0
      %802 = vmatprep.mubr.f32.mxu0 0.0
      %803 = vmatmul.mubr.f32.gmra.mrb[0].mxu0 %v609
      %v804 = vpop.f32.mrb[0].mxu0
      %v805 = vadd.f32 %v555, %v804
      %v806 = vpop.f32.mrb[0].mxu0
      %807 = vmatprep.mubr.f32.mxu0 0.0
      %808 = vmatmul.mubr.f32.gmra.mrb[0].mxu0 %v612
      %v809 = vpop.f32.mrb[0].mxu0
      %v810 = vadd.f32 %v555, %v809
      %v811 = vpop.f32.mrb[0].mxu0
      %812 = vmatprep.mubr.f32.mxu0 0.0
      %813 = vmatmul.mubr.f32.gmra.mrb[0].mxu0 %v615
      %v814 = vpop.f32.mrb[0].mxu0
      %v815 = vadd.f32 %v555, %v814
      %v816 = vpop.f32.mrb[0].mxu0
      %817 = vmatprep.mubr.f32.mxu0 0.0
      %818 = vmatmul.mubr.f32.gmra.mrb[0].mxu0 %v618
      %v819 = vpop.f32.mrb[0].mxu0
      %v820 = vadd.f32 %v555, %v819
      %v821 = vpop.f32.mrb[0].mxu0
      %822 = vmatprep.mubr.f32.mxu0 0.0
      %823 = vmatmul.mubr.f32.gmra.mrb[0].mxu0 %v621
      %v824 = vpop.f32.mrb[0].mxu0
      %v825 = vadd.f32 %v555, %v824
      %v826 = vpop.f32.mrb[0].mxu0
      %827 = vmatprep.mubr.f32.mxu0 0.0
      %828 = vmatmul.mubr.f32.gmra.mrb[0].mxu0 %v624
      %v829 = vpop.f32.mrb[0].mxu0
      %v830 = vadd.f32 %v555, %v829
      %v831 = vpop.f32.mrb[0].mxu0
      %832 = vmatprep.mubr.f32.mxu0 0.0
      %833 = vmatmul.mubr.f32.gmra.mrb[0].mxu0 %v627
      %v834 = vpop.f32.mrb[0].mxu0
      %v835 = vadd.f32 %v555, %v834
      %v836 = vpop.f32.mrb[0].mxu0
      %837 = vmatprep.mubr.f32.mxu0 0.0
      %838 = vmatmul.mubr.f32.gmra.mrb[0].mxu0 %v630
      %v839 = vpop.f32.mrb[0].mxu0
      %v840 = vadd.f32 %v555, %v839
      %v841 = vpop.f32.mrb[0].mxu0
      %842 = vmatprep.mubr.f32.mxu0 0.0
      %843 = vmatmul.mubr.f32.gmra.mrb[0].mxu0 %v633
      %v844 = vpop.f32.mrb[0].mxu0
      %v845 = vadd.f32 %v555, %v844
      %v846 = vpop.f32.mrb[0].mxu0
      %847 = vmatprep.mubr.f32.mxu0 0.0
      %848 = vmatmul.mubr.f32.gmra.mrb[0].mxu0 %v636
      %v849 = vpop.f32.mrb[0].mxu0
      %v850 = vadd.f32 %v555, %v849
      %v851 = vpop.f32.mrb[0].mxu0
      %852 = vmatprep.mubr.f32.mxu0 0.0
      %853 = vmatmul.mubr.f32.gmra.mrb[0].mxu0 %v639
      %v854 = vpop.f32.mrb[0].mxu0
      %v855 = vadd.f32 %v555, %v854
      %v856 = vpop.f32.mrb[0].mxu0
      %857 = vmatprep.mubr.f32.mxu0 0.0
      %858 = vmatmul.mubr.f32.gmra.mrb[0].mxu0 %v642
      %v859 = vpop.f32.mrb[0].mxu0
      %v860 = vadd.f32 %v555, %v859
      %v861 = vpop.f32.mrb[0].mxu0
      %862 = vmatprep.mubr.f32.mxu0 0.0
      %863 = vmatmul.mubr.f32.gmra.mrb[0].mxu0 %v645
      %v864 = vpop.f32.mrb[0].mxu0
      %v865 = vadd.f32 %v555, %v864
      %v866 = vpop.f32.mrb[0].mxu0
      %867 = vmatprep.mubr.f32.mxu0 0.0
      %868 = vmatmul.mubr.f32.gmra.mrb[0].mxu0 %v648
      %v869 = vpop.f32.mrb[0].mxu0
      %v870 = vadd.f32 %v555, %v869
      %v871 = vpop.f32.mrb[0].mxu0
      %872 = vmatprep.mubr.f32.mxu0 0.0
      %873 = vmatmul.mubr.f32.gmra.mrb[0].mxu0 %v651
      %v874 = vpop.f32.mrb[0].mxu0
      %v875 = vadd.f32 %v555, %v874
      %v876 = vpop.f32.mrb[0].mxu0
      %877 = vdwg.mxu0
      %v878 = vmax.f32 %v720, 0.0
      %v879 = vmax.f32 %v725, 0.0
      %v880 = vmax.f32 %v730, 0.0
      %v881 = vmax.f32 %v735, 0.0
      %v882 = vmax.f32 %v740, 0.0
      %v883 = vmax.f32 %v745, 0.0
      %v884 = vmax.f32 %v750, 0.0
      %v885 = vmax.f32 %v755, 0.0
      %v886 = vmax.f32 %v760, 0.0
      %v887 = vmax.f32 %v765, 0.0
      %v888 = vmax.f32 %v770, 0.0
      %v889 = vmax.f32 %v775, 0.0
      %v890 = vmax.f32 %v780, 0.0
      %v891 = vmax.f32 %v785, 0.0
      %v892 = vmax.f32 %v790, 0.0
      %v893 = vmax.f32 %v795, 0.0
      %v894 = vmax.f32 %v800, 0.0
      %v895 = vmax.f32 %v805, 0.0
      %v896 = vmax.f32 %v810, 0.0
      %v897 = vmax.f32 %v815, 0.0
      %v898 = vmax.f32 %v820, 0.0
      %v899 = vmax.f32 %v825, 0.0
      %v900 = vmax.f32 %v830, 0.0
      %v901 = vmax.f32 %v835, 0.0
      %v902 = vmax.f32 %v840, 0.0
      %v903 = vmax.f32 %v845, 0.0
      %v904 = vmax.f32 %v850, 0.0
      %v905 = vmax.f32 %v855, 0.0
      %v906 = vmax.f32 %v860, 0.0
      %v907 = vmax.f32 %v865, 0.0
      %v908 = vmax.f32 %v870, 0.0
      %v909 = vmax.f32 %v875, 0.0
      %v910 = vlaneseq
      %v911 = vshrl.u32 %v910, 7
      %v912 = vsub.s32 0, %v911
      %v913 = vrot.slane %v189, %v912
      %v915 = vsel %vm556, %v878, 0
      %v918 = vsel %vm556, %v879, 0
      %v921 = vsel %vm556, %v880, 0
      %v924 = vsel %vm556, %v881, 0
      %v927 = vsel %vm556, %v882, 0
      %v930 = vsel %vm556, %v883, 0
      %v933 = vsel %vm556, %v884, 0
      %v936 = vsel %vm556, %v885, 0
      %v939 = vsel %vm556, %v886, 0
      %v942 = vsel %vm556, %v887, 0
      %v945 = vsel %vm556, %v888, 0
      %v948 = vsel %vm556, %v889, 0
      %v951 = vsel %vm556, %v890, 0
      %v954 = vsel %vm556, %v891, 0
      %v957 = vsel %vm556, %v892, 0
      %v960 = vsel %vm556, %v893, 0
      %v963 = vsel %vm556, %v894, 0
      %v966 = vsel %vm556, %v895, 0
      %v969 = vsel %vm556, %v896, 0
      %v972 = vsel %vm556, %v897, 0
      %v975 = vsel %vm556, %v898, 0
      %v978 = vsel %vm556, %v899, 0
      %v981 = vsel %vm556, %v900, 0
      %v984 = vsel %vm556, %v901, 0
      %v987 = vsel %vm556, %v902, 0
      %v990 = vsel %vm556, %v903, 0
      %v993 = vsel %vm556, %v904, 0
      %v996 = vsel %vm556, %v905, 0
      %v999 = vsel %vm556, %v906, 0
      %v1002 = vsel %vm556, %v907, 0
      %v1005 = vsel %vm556, %v908, 0
      %v1008 = vsel %vm556, %v909, 0
      %1010 = vmatprep.subr.mxu0 0.0
      %1011 = vmatpush1.msra.mxu0 %v187
      %1012 = vmatprep.subr.mxu0 0.0
      %1013 = vmatpush1.msra.mxu0 %v188
      %1014 = vmatprep.subr.mxu0 0.0
      %1015 = vmatpush1.msra.mxu0 0.0
      %1016 = vmatprep.subr.mxu0 0.0
      %1017 = vmatpush1.msra.mxu0 0.0
      %1018 = vmatprep.subr.mxu0 0.0
      %1019 = vmatpush1.msra.mxu0 0.0
      %1020 = vmatprep.subr.mxu0 0.0
      %1021 = vmatpush1.msra.mxu0 0.0
      %1022 = vmatprep.subr.mxu0 0.0
      %1023 = vmatpush1.msra.mxu0 0.0
      %1024 = vmatprep.subr.mxu0 0.0
      %1025 = vmatpush1.msra.mxu0 0.0
      %1026 = vmatprep.subr.mxu0 0.0
      %1027 = vmatpush1.msra.mxu0 0.0
      %1028 = vmatprep.subr.mxu0 0.0
      %1029 = vmatpush1.msra.mxu0 0.0
      %1030 = vmatprep.subr.mxu0 0.0
      %1031 = vmatpush1.msra.mxu0 0.0
      %1032 = vmatprep.subr.mxu0 0.0
      %1033 = vmatpush1.msra.mxu0 0.0
      %1034 = vmatprep.subr.mxu0 0.0
      %1035 = vmatpush1.msra.mxu0 0.0
      %1036 = vmatprep.subr.mxu0 0.0
      %1037 = vmatpush1.msra.mxu0 0.0
      %1038 = vmatprep.subr.mxu0 0.0
      %1039 = vmatpush1.msra.mxu0 0.0
      %1040 = vmatprep.subr.mxu0 0.0
      %1041 = vmatpush1.msra.mxu0 0.0
      %1042 = vmatprep.subr.mxu0 0.0
      %1043 = vmatpush1.msra.mxu0 0.0
      %1044 = vmatprep.subr.mxu0 0.0
      %1045 = vmatpush1.msra.mxu0 0.0
      %1046 = vmatprep.subr.mxu0 0.0
      %1047 = vmatpush1.msra.mxu0 0.0
      %1048 = vmatprep.subr.mxu0 0.0
      %1049 = vmatpush1.msra.mxu0 0.0
      %1050 = vmatprep.subr.mxu0 0.0
      %1051 = vmatpush1.msra.mxu0 0.0
      %1052 = vmatprep.subr.mxu0 0.0
      %1053 = vmatpush1.msra.mxu0 0.0
      %1054 = vmatprep.subr.mxu0 0.0
      %1055 = vmatpush1.msra.mxu0 0.0
      %1056 = vmatprep.subr.mxu0 0.0
      %1057 = vmatpush1.msra.mxu0 0.0
      %1058 = vmatprep.subr.mxu0 0.0
      %1059 = vmatpush1.msra.mxu0 0.0
      %1060 = vmatprep.subr.mxu0 0.0
      %1061 = vmatpush1.msra.mxu0 0.0
      %1062 = vmatprep.subr.mxu0 0.0
      %1063 = vmatpush1.msra.mxu0 0.0
      %1064 = vmatprep.subr.mxu0 0.0
      %1065 = vmatpush1.msra.mxu0 0.0
      %1066 = vmatprep.subr.mxu0 0.0
      %1067 = vmatpush1.msra.mxu0 0.0
      %1068 = vmatprep.subr.mxu0 0.0
      %1069 = vmatpush1.msra.mxu0 0.0
      %1070 = vmatprep.subr.mxu0 0.0
      %1071 = vmatpush1.msra.mxu0 0.0
      %1072 = vmatprep.subr.mxu0 0.0
      %1073 = vmatpush1.msra.mxu0 0.0
      %1074 = vmatprep.mubr.f32.mxu0 0.0
      %1075 = vmatmul.mubr.f32.gmra.mrb[0].mxu0 %v915
      %v1076 = vpop.f32.mrb[0].mxu0
      %v1077 = vadd.f32 %v913, %v1076
      %v1078 = vpop.f32.mrb[0].mxu0
      %1079 = vmatprep.mubr.f32.mxu0 0.0
      %1080 = vmatmul.mubr.f32.gmra.mrb[0].mxu0 %v918
      %v1081 = vpop.f32.mrb[0].mxu0
      %v1082 = vadd.f32 %v913, %v1081
      %v1083 = vpop.f32.mrb[0].mxu0
      %1084 = vmatprep.mubr.f32.mxu0 0.0
      %1085 = vmatmul.mubr.f32.gmra.mrb[0].mxu0 %v921
      %v1086 = vpop.f32.mrb[0].mxu0
      %v1087 = vadd.f32 %v913, %v1086
      %v1088 = vpop.f32.mrb[0].mxu0
      %1089 = vmatprep.mubr.f32.mxu0 0.0
      %1090 = vmatmul.mubr.f32.gmra.mrb[0].mxu0 %v924
      %v1091 = vpop.f32.mrb[0].mxu0
      %v1092 = vadd.f32 %v913, %v1091
      %v1093 = vpop.f32.mrb[0].mxu0
      %1094 = vmatprep.mubr.f32.mxu0 0.0
      %1095 = vmatmul.mubr.f32.gmra.mrb[0].mxu0 %v927
      %v1096 = vpop.f32.mrb[0].mxu0
      %v1097 = vadd.f32 %v913, %v1096
      %v1098 = vpop.f32.mrb[0].mxu0
      %1099 = vmatprep.mubr.f32.mxu0 0.0
      %1100 = vmatmul.mubr.f32.gmra.mrb[0].mxu0 %v930
      %v1101 = vpop.f32.mrb[0].mxu0
      %v1102 = vadd.f32 %v913, %v1101
      %v1103 = vpop.f32.mrb[0].mxu0
      %1104 = vmatprep.mubr.f32.mxu0 0.0
      %1105 = vmatmul.mubr.f32.gmra.mrb[0].mxu0 %v933
      %v1106 = vpop.f32.mrb[0].mxu0
      %v1107 = vadd.f32 %v913, %v1106
      %v1108 = vpop.f32.mrb[0].mxu0
      %1109 = vmatprep.mubr.f32.mxu0 0.0
      %1110 = vmatmul.mubr.f32.gmra.mrb[0].mxu0 %v936
      %v1111 = vpop.f32.mrb[0].mxu0
      %v1112 = vadd.f32 %v913, %v1111
      %v1113 = vpop.f32.mrb[0].mxu0
      %1114 = vmatprep.mubr.f32.mxu0 0.0
      %1115 = vmatmul.mubr.f32.gmra.mrb[0].mxu0 %v939
      %v1116 = vpop.f32.mrb[0].mxu0
      %v1117 = vadd.f32 %v913, %v1116
      %v1118 = vpop.f32.mrb[0].mxu0
      %1119 = vmatprep.mubr.f32.mxu0 0.0
      %1120 = vmatmul.mubr.f32.gmra.mrb[0].mxu0 %v942
      %v1121 = vpop.f32.mrb[0].mxu0
      %v1122 = vadd.f32 %v913, %v1121
      %v1123 = vpop.f32.mrb[0].mxu0
      %1124 = vmatprep.mubr.f32.mxu0 0.0
      %1125 = vmatmul.mubr.f32.gmra.mrb[0].mxu0 %v945
      %v1126 = vpop.f32.mrb[0].mxu0
      %v1127 = vadd.f32 %v913, %v1126
      %v1128 = vpop.f32.mrb[0].mxu0
      %1129 = vmatprep.mubr.f32.mxu0 0.0
      %1130 = vmatmul.mubr.f32.gmra.mrb[0].mxu0 %v948
      %v1131 = vpop.f32.mrb[0].mxu0
      %v1132 = vadd.f32 %v913, %v1131
      %v1133 = vpop.f32.mrb[0].mxu0
      %1134 = vmatprep.mubr.f32.mxu0 0.0
      %1135 = vmatmul.mubr.f32.gmra.mrb[0].mxu0 %v951
      %v1136 = vpop.f32.mrb[0].mxu0
      %v1137 = vadd.f32 %v913, %v1136
      %v1138 = vpop.f32.mrb[0].mxu0
      %1139 = vmatprep.mubr.f32.mxu0 0.0
      %1140 = vmatmul.mubr.f32.gmra.mrb[0].mxu0 %v954
      %v1141 = vpop.f32.mrb[0].mxu0
      %v1142 = vadd.f32 %v913, %v1141
      %v1143 = vpop.f32.mrb[0].mxu0
      %1144 = vmatprep.mubr.f32.mxu0 0.0
      %1145 = vmatmul.mubr.f32.gmra.mrb[0].mxu0 %v957
      %v1146 = vpop.f32.mrb[0].mxu0
      %v1147 = vadd.f32 %v913, %v1146
      %v1148 = vpop.f32.mrb[0].mxu0
      %1149 = vmatprep.mubr.f32.mxu0 0.0
      %1150 = vmatmul.mubr.f32.gmra.mrb[0].mxu0 %v960
      %v1151 = vpop.f32.mrb[0].mxu0
      %v1152 = vadd.f32 %v913, %v1151
      %v1153 = vpop.f32.mrb[0].mxu0
      %1154 = vmatprep.mubr.f32.mxu0 0.0
      %1155 = vmatmul.mubr.f32.gmra.mrb[0].mxu0 %v963
      %v1156 = vpop.f32.mrb[0].mxu0
      %v1157 = vadd.f32 %v913, %v1156
      %v1158 = vpop.f32.mrb[0].mxu0
      %1159 = vmatprep.mubr.f32.mxu0 0.0
      %1160 = vmatmul.mubr.f32.gmra.mrb[0].mxu0 %v966
      %v1161 = vpop.f32.mrb[0].mxu0
      %v1162 = vadd.f32 %v913, %v1161
      %v1163 = vpop.f32.mrb[0].mxu0
      %1164 = vmatprep.mubr.f32.mxu0 0.0
      %1165 = vmatmul.mubr.f32.gmra.mrb[0].mxu0 %v969
      %v1166 = vpop.f32.mrb[0].mxu0
      %v1167 = vadd.f32 %v913, %v1166
      %v1168 = vpop.f32.mrb[0].mxu0
      %1169 = vmatprep.mubr.f32.mxu0 0.0
      %1170 = vmatmul.mubr.f32.gmra.mrb[0].mxu0 %v972
      %v1171 = vpop.f32.mrb[0].mxu0
      %v1172 = vadd.f32 %v913, %v1171
      %v1173 = vpop.f32.mrb[0].mxu0
      %1174 = vmatprep.mubr.f32.mxu0 0.0
      %1175 = vmatmul.mubr.f32.gmra.mrb[0].mxu0 %v975
      %v1176 = vpop.f32.mrb[0].mxu0
      %v1177 = vadd.f32 %v913, %v1176
      %v1178 = vpop.f32.mrb[0].mxu0
      %1179 = vmatprep.mubr.f32.mxu0 0.0
      %1180 = vmatmul.mubr.f32.gmra.mrb[0].mxu0 %v978
      %v1181 = vpop.f32.mrb[0].mxu0
      %v1182 = vadd.f32 %v913, %v1181
      %v1183 = vpop.f32.mrb[0].mxu0
      %1184 = vmatprep.mubr.f32.mxu0 0.0
      %1185 = vmatmul.mubr.f32.gmra.mrb[0].mxu0 %v981
      %v1186 = vpop.f32.mrb[0].mxu0
      %v1187 = vadd.f32 %v913, %v1186
      %v1188 = vpop.f32.mrb[0].mxu0
      %1189 = vmatprep.mubr.f32.mxu0 0.0
      %1190 = vmatmul.mubr.f32.gmra.mrb[0].mxu0 %v984
      %v1191 = vpop.f32.mrb[0].mxu0
      %v1192 = vadd.f32 %v913, %v1191
      %v1193 = vpop.f32.mrb[0].mxu0
      %1194 = vmatprep.mubr.f32.mxu0 0.0
      %1195 = vmatmul.mubr.f32.gmra.mrb[0].mxu0 %v987
      %v1196 = vpop.f32.mrb[0].mxu0
      %v1197 = vadd.f32 %v913, %v1196
      %v1198 = vpop.f32.mrb[0].mxu0
      %1199 = vmatprep.mubr.f32.mxu0 0.0
      %1200 = vmatmul.mubr.f32.gmra.mrb[0].mxu0 %v990
      %v1201 = vpop.f32.mrb[0].mxu0
      %v1202 = vadd.f32 %v913, %v1201
      %v1203 = vpop.f32.mrb[0].mxu0
      %1204 = vmatprep.mubr.f32.mxu0 0.0
      %1205 = vmatmul.mubr.f32.gmra.mrb[0].mxu0 %v993
      %v1206 = vpop.f32.mrb[0].mxu0
      %v1207 = vadd.f32 %v913, %v1206
      %v1208 = vpop.f32.mrb[0].mxu0
      %1209 = vmatprep.mubr.f32.mxu0 0.0
      %1210 = vmatmul.mubr.f32.gmra.mrb[0].mxu0 %v996
      %v1211 = vpop.f32.mrb[0].mxu0
      %v1212 = vadd.f32 %v913, %v1211
      %v1213 = vpop.f32.mrb[0].mxu0
      %1214 = vmatprep.mubr.f32.mxu0 0.0
      %1215 = vmatmul.mubr.f32.gmra.mrb[0].mxu0 %v999
      %v1216 = vpop.f32.mrb[0].mxu0
      %v1217 = vadd.f32 %v913, %v1216
      %v1218 = vpop.f32.mrb[0].mxu0
      %1219 = vmatprep.mubr.f32.mxu0 0.0
      %1220 = vmatmul.mubr.f32.gmra.mrb[0].mxu0 %v1002
      %v1221 = vpop.f32.mrb[0].mxu0
      %v1222 = vadd.f32 %v913, %v1221
      %v1223 = vpop.f32.mrb[0].mxu0
      %1224 = vmatprep.mubr.f32.mxu0 0.0
      %1225 = vmatmul.mubr.f32.gmra.mrb[0].mxu0 %v1005
      %v1226 = vpop.f32.mrb[0].mxu0
      %v1227 = vadd.f32 %v913, %v1226
      %v1228 = vpop.f32.mrb[0].mxu0
      %1229 = vmatprep.mubr.f32.mxu0 0.0
      %1230 = vmatmul.mubr.f32.gmra.mrb[0].mxu0 %v1008
      %v1231 = vpop.f32.mrb[0].mxu0
      %v1232 = vadd.f32 %v913, %v1231
      %v1233 = vpop.f32.mrb[0].mxu0
      %1234 = vdwg.mxu0
      %1235 = vst.msk [vmem:[%s145] sm:$0xff] %vm194, %v1077
      %1236 = vst.msk [vmem:[%s145 + $0x8] sm:$0xff] %vm194, %v1082
      %1237 = vst.msk [vmem:[%s145 + $0x10] sm:$0xff] %vm194, %v1087
      %1238 = vst.msk [vmem:[%s145 + $0x18] sm:$0xff] %vm194, %v1092
      %1239 = vst.msk [vmem:[%s145 + $0x20] sm:$0xff] %vm194, %v1097
      %1240 = vst.msk [vmem:[%s145 + $0x28] sm:$0xff] %vm194, %v1102
      %1241 = vst.msk [vmem:[%s145 + $0x30] sm:$0xff] %vm194, %v1107
      %1242 = vst.msk [vmem:[%s145 + $0x38] sm:$0xff] %vm194, %v1112
      %1243 = vst.msk [vmem:[%s145 + $0x40] sm:$0xff] %vm194, %v1117
      %1244 = vst.msk [vmem:[%s145 + $0x48] sm:$0xff] %vm194, %v1122
      %1245 = vst.msk [vmem:[%s145 + $0x50] sm:$0xff] %vm194, %v1127
      %1246 = vst.msk [vmem:[%s145 + $0x58] sm:$0xff] %vm194, %v1132
      %1247 = vst.msk [vmem:[%s145 + $0x60] sm:$0xff] %vm194, %v1137
      %1248 = vst.msk [vmem:[%s145 + $0x68] sm:$0xff] %vm194, %v1142
      %1249 = vst.msk [vmem:[%s145 + $0x70] sm:$0xff] %vm194, %v1147
      %1250 = vst.msk [vmem:[%s145 + $0x78] sm:$0xff] %vm194, %v1152
      %1251 = vst.msk [vmem:[%s145 + $0x80] sm:$0xff] %vm194, %v1157
      %1252 = vst.msk [vmem:[%s145 + $0x88] sm:$0xff] %vm194, %v1162
      %1253 = vst.msk [vmem:[%s145 + $0x90] sm:$0xff] %vm194, %v1167
      %1254 = vst.msk [vmem:[%s145 + $0x98] sm:$0xff] %vm194, %v1172
      %1255 = vst.msk [vmem:[%s145 + $0xa0] sm:$0xff] %vm194, %v1177
      %1256 = vst.msk [vmem:[%s145 + $0xa8] sm:$0xff] %vm194, %v1182
      %1257 = vst.msk [vmem:[%s145 + $0xb0] sm:$0xff] %vm194, %v1187
      %1258 = vst.msk [vmem:[%s145 + $0xb8] sm:$0xff] %vm194, %v1192
      %1259 = vst.msk [vmem:[%s145 + $0xc0] sm:$0xff] %vm194, %v1197
      %1260 = vst.msk [vmem:[%s145 + $0xc8] sm:$0xff] %vm194, %v1202
      %1261 = vst.msk [vmem:[%s145 + $0xd0] sm:$0xff] %vm194, %v1207
      %1262 = vst.msk [vmem:[%s145 + $0xd8] sm:$0xff] %vm194, %v1212
      %1263 = vst.msk [vmem:[%s145 + $0xe0] sm:$0xff] %vm194, %v1217
      %1264 = vst.msk [vmem:[%s145 + $0xe8] sm:$0xff] %vm194, %v1222
      %1265 = vst.msk [vmem:[%s145 + $0xf0] sm:$0xff] %vm194, %v1227
      %1266 = vst.msk [vmem:[%s145 + $0xf8] sm:$0xff] %vm194, %v1232
      %s1267 = smul.u32 32, %s13
      %p1268 = scmp.lt.s32.totalorder %s1267, 127
      %s1269 = scalar_select %p1268, %s1267, 127
      %s1270 = smul.addr %s1269, 8
      %s1271 = scalar_lea.vmem %s2, %s1270
      // Predicated region
      $region29: #{tpu_custom_call.1} parent=27 // pred_check
        %p1272 = pneg %p78
      $region30: #{tpu_custom_call.1} parent=27 // pred_check_branch
        %1274 = sbr.rel (%p1272) target = $region32
      $region31: #{tpu_custom_call.1} parent=27 // pred_region
        %s1275 = smul.u32 32, %s13
      $region32: #{tpu_custom_call.1} parent=27 // pred_fallthru
        _
    $region28: #{tpu_custom_call.1} parent=5 // pred_fallthru
      _
    %p1276 = scmp.le.s32.totalorder 2, %s8
    // Predicated region
    $region33: #{tpu_custom_call.1} parent=5 // pred_check
      %p1277 = pneg %p1276
    $region34: #{tpu_custom_call.1} parent=5 // pred_check_branch
      %1279 = sbr.rel (%p1277) target = $region36
    $region35: #{tpu_custom_call.1} parent=5 // pred_region
      %s1280 = ssub.s32 %s8, 2
      // Predicated region
      $region37: #{tpu_custom_call.1} parent=35 // pred_check
        %p1281 = pneg %p84
      $region38: #{tpu_custom_call.1} parent=35 // pred_check_branch
        %1283 = sbr.rel (%p1281) target = $region40
      $region39: #{tpu_custom_call.1} parent=35 // pred_region
        %s1284 = smul.u32 32, %s14
        %p1285 = scmp.lt.s32.totalorder %s1284, 127
        %s1286 = scalar_select %p1285, %s1284, 127
        %s1287 = smul.addr %s1286, 8
        %s1288 = scalar_lea.vmem %s2, %s1287
      $region40: #{tpu_custom_call.1} parent=35 // pred_fallthru
        _
    $region36: #{tpu_custom_call.1} parent=5 // pred_fallthru
      _
  $region6: #{tpu_custom_call.1} parent=0 // loop_footer
    %s12 = sadd.s32 1, %s8
  $region7: #{tpu_custom_call.1} parent=0 // loop_footer_branch
    %7 = sbr.rel target = $region3
  $region8: #{tpu_custom_call.1} parent=0 // loop_exit
    _

</llo_original>
